<compile_context>
chip_gen: v5e
topology: v5e:2x2
jax: 0.10.0
libtpu: 0.0.40
codegen_flags: <defaults>
</compile_context>

<pallas_src>
import jax
import jax.numpy as jnp
from jax import lax
from jax.experimental import pallas as pl
from jax.experimental.pallas import tpu as pltpu

KSIZE = 7
PAD = KSIZE // 2


def _cbam_kernel(x_ref, w1t_ref, w2t_ref, k_ref, o_ref):
    # x_ref/o_ref: (TN, C, HW); w1t: (C, Cr); w2t: (Cr, C); k_ref: (2*HW, HW)
    tn, C, HW = x_ref.shape
    inv_hw = 1.0 / HW
    inv_c = 1.0 / C

    x = x_ref[...].astype(jnp.float32)                        # (TN, C, HW)

    # ---------------- Channel attention (batched over TN) ----------------
    avg = jnp.sum(x, axis=2) * inv_hw                         # (TN, C)
    mx = jnp.max(x, axis=2)                                   # (TN, C)
    pooled = jnp.concatenate([avg, mx], axis=0)               # (2*TN, C)

    w1t = w1t_ref[...].astype(jnp.float32)                    # (C, Cr)
    w2t = w2t_ref[...].astype(jnp.float32)                    # (Cr, C)
    h1 = jnp.maximum(
        jnp.dot(pooled, w1t, preferred_element_type=jnp.float32), 0.0)
    o2 = jnp.dot(h1, w2t, preferred_element_type=jnp.float32)  # (2*TN, C)
    ca = jax.nn.sigmoid(o2[:tn] + o2[tn:])                    # (TN, C)

    x1 = x * ca[:, :, None]                                   # (TN, C, HW)

    # ---------------- Spatial attention (batched over TN) ----------------
    avg_c = jnp.sum(x1, axis=1) * inv_c                       # (TN, HW)
    max_c = jnp.max(x1, axis=1)                               # (TN, HW)
    maps = jnp.concatenate([avg_c, max_c], axis=1)            # (TN, 2*HW)

    # 7x7 conv (2 -> 1 channel, zero pad 3) as ONE dense matmul over all TN.
    conv = jnp.dot(maps.astype(k_ref.dtype), k_ref[...],
                   preferred_element_type=jnp.float32)        # (TN, HW)
    sa = jax.nn.sigmoid(conv)                                 # (TN, HW)

    o_ref[...] = (x1 * sa[:, None, :]).astype(o_ref.dtype)


def _build_conv_matrix(w_sp, H, W, dtype):
    """Dense (2*H*W, H*W) matrix K such that, for flattened pooled maps
    m = [avg.ravel() | max.ravel()] (length 2*H*W):
        conv2d_7x7(cat(avg, max), pad=3).ravel() == m @ K
    Rows are indexed (channel, h_in, w_in); cols are (h_out, w_out)."""
    HW = H * W
    hh = jnp.arange(H)
    ww = jnp.arange(W)
    dh = hh[:, None] - hh[None, :] + PAD          # (H_in, H_out): hi - ho + PAD
    dw = ww[:, None] - ww[None, :] + PAD          # (W_in, W_out): wi - wo + PAD
    valid = (((dh >= 0) & (dh < KSIZE))[:, :, None, None]
             & ((dw >= 0) & (dw < KSIZE))[None, None, :, :])
    idx_h = jnp.clip(dh, 0, KSIZE - 1)
    idx_w = jnp.clip(dw, 0, KSIZE - 1)
    w_sp = w_sp.astype(jnp.float32)
    k = w_sp[:, idx_h, :][..., idx_w]             # (2, Hi, Ho, Wi, Wo)
    k = jnp.where(valid[None], k, 0.0)
    k = k.transpose(0, 1, 3, 2, 4).reshape(2 * HW, HW)
    return k.astype(dtype)


def _pick_tn(n, bytes_per_sample, target_bytes=6 << 20):
    """Largest TN dividing N with x+out block <= target_bytes.  Among the
    candidates that fit, prefer ones that give an EVEN grid (keeps both v7x
    TensorCores evenly loaded under megacore sharding); on single-TC chips the
    choice only changes per-step overhead marginally."""
    fitting = [tn for tn in range(1, n + 1)
               if n % tn == 0 and tn * bytes_per_sample <= target_bytes]
    if not fitting:
        return 1
    even_grid = [tn for tn in fitting if (n // tn) % 2 == 0]
    return max(even_grid) if even_grid else max(fitting)


def cbam2d(x, w_fc1, w_fc2, w_sp, conv_dtype=jnp.bfloat16):
    """CBAM2d forward.

    x:     (N, C, H, W) float32
    w_fc1: (C // ratio, C)   -- fc1 1x1-conv weight (no bias)
    w_fc2: (C, C // ratio)   -- fc2 1x1-conv weight (no bias)
    w_sp:  (2, 7, 7)         -- spatial 7x7 conv weight (out channel squeezed)
    conv_dtype: MXU operand dtype for the spatial conv (bf16 by default; all
                VPU/EUP math stays f32).
    """
    N, C, H, W = x.shape
    Cr = w_fc1.shape[0]
    HW = H * W

    k_bytes = 2 * HW * HW * jnp.dtype(conv_dtype).itemsize
    if k_bytes > (8 << 20):
        # TODO(synk): for large H*W, replace the dense O((H*W)^2) conv matrix
        # with a pltpu.roll-based 7x7 conv (XLU+VPU) to stay within v7x VMEM.
        raise NotImplementedError(
            "dense conv matrix too large for VMEM at this spatial size")

    k_mat = _build_conv_matrix(w_sp, H, W, conv_dtype)   # (2*HW, HW)
    w1t = jnp.asarray(w_fc1, jnp.float32).T              # (C, Cr)
    w2t = jnp.asarray(w_fc2, jnp.float32).T              # (Cr, C)

    x_flat = x.reshape(N, C, HW)                          # lane-dense layout
    bytes_per_sample = 2 * C * HW * x.dtype.itemsize      # in + out
    tn = _pick_tn(N, bytes_per_sample)

    # VMEM budget: double-buffered in/out blocks + double-buffered constants
    # (K, w1t, w2t) + headroom; capped at 64 MiB so it is legal on v7x too.
    block_bytes = tn * C * HW * x.dtype.itemsize
    const_bytes = k_bytes + (C * Cr + Cr * C) * 4
    needed = 4 * block_bytes + 2 * const_bytes + (4 << 20)
    vmem_limit = int(min(max(needed, 32 << 20), 64 << 20))

    out_flat = pl.pallas_call(
        _cbam_kernel,
        out_shape=jax.ShapeDtypeStruct((N, C, HW), x.dtype),
        grid_spec=pltpu.PrefetchScalarGridSpec(
            num_scalar_prefetch=0,
            grid=(N // tn,),
            in_specs=[
                pl.BlockSpec((tn, C, HW), lambda n: (n, 0, 0)),
                pl.BlockSpec((C, Cr), lambda n: (0, 0)),
                pl.BlockSpec((Cr, C), lambda n: (0, 0)),
                pl.BlockSpec((2 * HW, HW), lambda n: (0, 0)),
            ],
            out_specs=pl.BlockSpec((tn, C, HW), lambda n: (n, 0, 0)),
        ),
        compiler_params=pltpu.CompilerParams(
            dimension_semantics=("parallel",),
            vmem_limit_bytes=vmem_limit),
    )(x_flat, w1t, w2t, k_mat)

    return out_flat.reshape(N, C, H, W)


def cbam2d_reference(x, w_fc1, w_fc2, w_sp):
    """Pure-JAX reference matching the PyTorch forward semantics."""
    avg = jnp.mean(x, axis=(2, 3), keepdims=True)
    mx = jnp.max(x, axis=(2, 3), keepdims=True)

    def mlp(v):
        h = jnp.einsum("rc,ncij->nrij", w_fc1, v)
        h = jnp.maximum(h, 0.0)
        return jnp.einsum("cr,nrij->ncij", w_fc2, h)

    ca = jax.nn.sigmoid(mlp(avg) + mlp(mx))
    x1 = x * ca

    avg_c = jnp.mean(x1, axis=1, keepdims=True)
    max_c = jnp.max(x1, axis=1, keepdims=True)
    cat = jnp.concatenate([avg_c, max_c], axis=1)
    conv = lax.conv_general_dilated(
        cat, w_sp[None], window_strides=(1, 1),
        padding=((PAD, PAD), (PAD, PAD)),
        dimension_numbers=("NCHW", "OIHW", "NCHW"))
    sa = jax.nn.sigmoid(conv)
    return x1 * sa


if __name__ == "__main__":
    N, C, H, W = 2, 32, 16, 16
    ratio = 8
    Cr = C // ratio

    key = jax.random.PRNGKey(0)
    kx, k1, k2, k3 = jax.random.split(key, 4)
    x = jax.random.normal(kx, (N, C, H, W), jnp.float32)
    w_fc1 = jax.random.normal(k1, (Cr, C), jnp.float32) * 0.1
    w_fc2 = jax.random.normal(k2, (C, Cr), jnp.float32) * 0.1
    w_sp = jax.random.normal(k3, (2, KSIZE, KSIZE), jnp.float32) * 0.1

    out = jax.block_until_ready(cbam2d(x, w_fc1, w_fc2, w_sp))
    ref = cbam2d_reference(x, w_fc1, w_fc2, w_sp)

    assert out.shape == (N, C, H, W)
    max_err = float(jnp.max(jnp.abs(out - ref)))
    # bf16 MXU operands on the spatial conv -> slightly relaxed tolerance.
    assert jnp.allclose(out, ref, atol=5e-3, rtol=5e-3), max_err
    print("KERNEL_OK")
</pallas_src>

<mosaic_0001>
module attributes {stable_mosaic.version = 11 : i64} {
  func.func @_cbam_kernel(%arg0: i32, %arg1: memref<1x32x256xf32, #tpu.memory_space<vmem>>, %arg2: memref<32x4xf32, #tpu.memory_space<vmem>>, %arg3: memref<4x32xf32, #tpu.memory_space<vmem>>, %arg4: memref<512x256xbf16, #tpu.memory_space<vmem>>, %arg5: memref<1x32x256xf32, #tpu.memory_space<vmem>>) attributes {dimension_semantics = [#tpu.dimension_semantics<parallel>], iteration_bounds = array<i64: 2>, scalar_prefetch = 0 : i64, scratch_operands = 0 : i64, tpu.core_type = #tpu.core_type<tc>, window_params = [{transform_indices = @transform_0, window_bounds = array<i64: 1, 32, 256>}, {pipeline_mode = #tpu.pipeline_mode<synchronous>, transform_indices = @transform_1, window_bounds = array<i64: 32, 4>}, {pipeline_mode = #tpu.pipeline_mode<synchronous>, transform_indices = @transform_2, window_bounds = array<i64: 4, 32>}, {pipeline_mode = #tpu.pipeline_mode<synchronous>, transform_indices = @transform_3, window_bounds = array<i64: 512, 256>}, {transform_indices = @transform_4, window_bounds = array<i64: 1, 32, 256>}]} {
    %c0 = arith.constant 0 : index
    %c0_0 = arith.constant 0 : index
    %c0_1 = arith.constant 0 : index
    %0 = vector.load %arg1[%c0, %c0_0, %c0_1] : memref<1x32x256xf32, #tpu.memory_space<vmem>>, vector<1x32x256xf32>
    %cst = arith.constant dense<0.000000e+00> : vector<1x32xf32>
    %1 = vector.multi_reduction <add>, %0, %cst [2] : vector<1x32x256xf32> to vector<1x32xf32>
    %cst_2 = arith.constant 3.906250e-03 : f32
    %2 = vector.broadcast %cst_2 : f32 to vector<1x32xf32>
    %3 = arith.mulf %1, %2 : vector<1x32xf32>
    %cst_3 = arith.constant dense<0xFF800000> : vector<1x32xf32>
    %4 = vector.multi_reduction <maximumf>, %0, %cst_3 [2] : vector<1x32x256xf32> to vector<1x32xf32>
    %5 = tpu.concatenate %3, %4 in 0 : vector<1x32xf32>, vector<1x32xf32> -> vector<2x32xf32>
    %c0_4 = arith.constant 0 : index
    %c0_5 = arith.constant 0 : index
    %6 = vector.load %arg2[%c0_4, %c0_5] : memref<32x4xf32, #tpu.memory_space<vmem>>, vector<32x4xf32>
    %c0_6 = arith.constant 0 : index
    %c0_7 = arith.constant 0 : index
    %7 = vector.load %arg3[%c0_6, %c0_7] : memref<4x32xf32, #tpu.memory_space<vmem>>, vector<4x32xf32>
    %cst_8 = arith.constant dense<0.000000e+00> : vector<2x4xf32>
    %8 = tpu.matmul %5, %6, %cst_8 {dimension_numbers = #tpu.dot_dimension_numbers<[1], [0], [0], [1], [0, 0, 1, 1], [], []>} : vector<2x32xf32>, vector<32x4xf32>, vector<2x4xf32> -> vector<2x4xf32>
    %cst_9 = arith.constant 0.000000e+00 : f32
    %9 = vector.broadcast %cst_9 : f32 to vector<2x4xf32>
    %10 = arith.maximumf %8, %9 : vector<2x4xf32>
    %cst_10 = arith.constant dense<0.000000e+00> : vector<2x32xf32>
    %11 = tpu.matmul %10, %7, %cst_10 {dimension_numbers = #tpu.dot_dimension_numbers<[1], [0], [0], [1], [0, 0, 1, 1], [], []>} : vector<2x4xf32>, vector<4x32xf32>, vector<2x32xf32> -> vector<2x32xf32>
    %12 = vector.extract_strided_slice %11 {offsets = [0, 0], sizes = [1, 32], strides = [1, 1]} : vector<2x32xf32> to vector<1x32xf32>
    %13 = vector.extract_strided_slice %11 {offsets = [1, 0], sizes = [1, 32], strides = [1, 1]} : vector<2x32xf32> to vector<1x32xf32>
    %14 = arith.addf %12, %13 : vector<1x32xf32>
    %15 = arith.negf %14 : vector<1x32xf32>
    %16 = math.exp %15 : vector<1x32xf32>
    %cst_11 = arith.constant 1.000000e+00 : f32
    %17 = vector.broadcast %cst_11 : f32 to vector<1x32xf32>
    %18 = arith.addf %17, %16 : vector<1x32xf32>
    %19 = arith.divf %17, %18 : vector<1x32xf32>
    %20 = vector.shape_cast %19 : vector<1x32xf32> to vector<1x32x1xf32>
    %21 = vector.broadcast %20 : vector<1x32x1xf32> to vector<1x32x256xf32>
    %22 = arith.mulf %0, %21 : vector<1x32x256xf32>
    %cst_12 = arith.constant dense<0.000000e+00> : vector<1x256xf32>
    %23 = vector.multi_reduction <add>, %22, %cst_12 [1] : vector<1x32x256xf32> to vector<1x256xf32>
    %cst_13 = arith.constant 3.125000e-02 : f32
    %24 = vector.broadcast %cst_13 : f32 to vector<1x256xf32>
    %25 = arith.mulf %23, %24 : vector<1x256xf32>
    %cst_14 = arith.constant dense<0xFF800000> : vector<1x256xf32>
    %26 = vector.multi_reduction <maximumf>, %22, %cst_14 [1] : vector<1x32x256xf32> to vector<1x256xf32>
    %27 = tpu.concatenate %25, %26 in 1 : vector<1x256xf32>, vector<1x256xf32> -> vector<1x512xf32>
    %28 = arith.truncf %27 : vector<1x512xf32> to vector<1x512xbf16>
    %c0_15 = arith.constant 0 : index
    %c0_16 = arith.constant 0 : index
    %29 = vector.load %arg4[%c0_15, %c0_16] : memref<512x256xbf16, #tpu.memory_space<vmem>>, vector<512x256xbf16>
    %cst_17 = arith.constant dense<0.000000e+00> : vector<1x256xf32>
    %30 = tpu.matmul %28, %29, %cst_17 {dimension_numbers = #tpu.dot_dimension_numbers<[1], [0], [0], [1], [0, 0, 1, 1], [], []>} : vector<1x512xbf16>, vector<512x256xbf16>, vector<1x256xf32> -> vector<1x256xf32>
    %31 = arith.negf %30 : vector<1x256xf32>
    %32 = math.exp %31 : vector<1x256xf32>
    %cst_18 = arith.constant 1.000000e+00 : f32
    %33 = vector.broadcast %cst_18 : f32 to vector<1x256xf32>
    %34 = arith.addf %33, %32 : vector<1x256xf32>
    %35 = arith.divf %33, %34 : vector<1x256xf32>
    %36 = vector.shape_cast %35 : vector<1x256xf32> to vector<1x1x256xf32>
    %37 = vector.broadcast %36 : vector<1x1x256xf32> to vector<1x32x256xf32>
    %38 = arith.mulf %22, %37 : vector<1x32x256xf32>
    %c0_19 = arith.constant 0 : index
    %c0_20 = arith.constant 0 : index
    %c0_21 = arith.constant 0 : index
    %39 = vector.load %arg5[%c0_19, %c0_20, %c0_21] : memref<1x32x256xf32, #tpu.memory_space<vmem>>, vector<1x32x256xf32>
    tpu.vector_store %arg5[%c0_19, %c0_20, %c0_21], %38 {strides = array<i32>} : memref<1x32x256xf32, #tpu.memory_space<vmem>>, vector<1x32x256xf32>,
    return
  }
  func.func @transform_0(%arg0: i32) -> (i32, i32, i32) {
    %c0_i32 = arith.constant 0 : i32
    %c0_i32_0 = arith.constant 0 : i32
    %c0_i32_1 = arith.constant 0 : i32
    return %arg0, %c0_i32, %c0_i32_0 : i32, i32, i32
  }
  func.func @transform_1(%arg0: i32) -> (i32, i32) {
    %c0_i32 = arith.constant 0 : i32
    %c0_i32_0 = arith.constant 0 : i32
    %c0_i32_1 = arith.constant 0 : i32
    return %c0_i32, %c0_i32_0 : i32, i32
  }
  func.func @transform_2(%arg0: i32) -> (i32, i32) {
    %c0_i32 = arith.constant 0 : i32
    %c0_i32_0 = arith.constant 0 : i32
    %c0_i32_1 = arith.constant 0 : i32
    return %c0_i32, %c0_i32_0 : i32, i32
  }
  func.func @transform_3(%arg0: i32) -> (i32, i32) {
    %c0_i32 = arith.constant 0 : i32
    %c0_i32_0 = arith.constant 0 : i32
    %c0_i32_1 = arith.constant 0 : i32
    return %c0_i32, %c0_i32_0 : i32, i32
  }
  func.func @transform_4(%arg0: i32) -> (i32, i32, i32) {
    %c0_i32 = arith.constant 0 : i32
    %c0_i32_0 = arith.constant 0 : i32
    %c0_i32_1 = arith.constant 0 : i32
    return %arg0, %c0_i32, %c0_i32_0 : i32, i32, i32
  }
}

</mosaic_0001>

<llo_original>
// kernel: tpu_custom_call.1
$region0: #{tpu_custom_call.1}
  #allocation0 [shape = 'u32[]', space=smem, size = 0x4, offset = 0x4, fixed_abs, tag = 'smem constant byte address 0x4 - core index']
  #allocation1 [shape = 'u32[72,128]{1,0:T(1,128)}', space=vmem, size = 0x9000, scoped, tag = 'internal scratch']
  %s0 = inlined_call_operand.hbm [shape: f32[2,32,256], index: 0, kind: input, shape index: {}]
  %s1 = inlined_call_operand.vmem [shape: f32[32,4], index: 1, kind: input, shape index: {}]
  %s2 = inlined_call_operand.vmem [shape: f32[4,32], index: 2, kind: input, shape index: {}]
  %s3 = inlined_call_operand.hbm [shape: bf16[512,256], index: 3, kind: input, shape index: {}]
  %s4 = inlined_call_operand.hbm [shape: f32[2,32,256], index: 4, kind: output, shape index: {}]
  %s5 = sld [smem:[#allocation0]]
  $region57: #{tpu_custom_call.1} parent=0
    _
  %s7 = ssub.s32 1, %s5
  %s8 = scalar_select 0, %s7, %s5
  $region1: #{tpu_custom_call.1} parent=0
    #allocation2 [shape = 'u8[65536]{0}', space=vmem, size = 0x10000, scoped, tag = 'input window, operand 0']
    #allocation3 [shape = 's32[2]{0}', space=sflag, size = 0x8, scoped, tag = 'scoped memory for tpu_custom_call.1']
    #allocation4 [shape = 's32[2]{0}', space=sflag, size = 0x8, scoped, tag = 'scoped memory for tpu_custom_call.1']
    #allocation5 [shape = 'u8[262144]{0}', space=vmem, size = 0x40000, scoped, tag = 'input window, operand 3, single buffered']
    #allocation6 [shape = 's32[1]{0}', space=sflag, size = 0x4, scoped, tag = 'scoped memory for tpu_custom_call.1']
    #allocation7 [shape = 'u8[65536]{0}', space=vmem, size = 0x10000, scoped, tag = 'output window, operand 0']
    %9 = vsyncpa [#allocation3], 0
    %s10 = scalar_lea.sflag [#allocation3], 1
    %11 = vsyncpa %s10, 0
    %12 = vsyncpa [#allocation6], 0
    %13 = vsyncpa [#allocation4], 0
    %s14 = scalar_lea.sflag [#allocation4], 1
    %15 = vsyncpa %s14, 0
    loop: start=0, step=1, limit=4
    $region2: #{tpu_custom_call.1} parent=1 // loop_pre_header
      _
    $region3: #{tpu_custom_call.1} parent=1 // loop_header
      %s17 = sphi 0, %s21
      %p18 = scmp.ge.s32.totalorder %s17, 4
      %s27 = sphi 0, %s29
      %s30 = sphi 0, %s27
      %s31 = sphi 0, %s30
      %s47 = sphi 0, %s31
      %s51 = sphi 0, %s51
      %s53 = sphi 0, %s51
      %s54 = sphi 0, %s53
      %s68 = sphi 0, %s54
      %s72 = sphi 0, %s72
      %s74 = sphi 0, %s72
      %s75 = sphi 0, %s74
      %s89 = sphi 0, %s75
      %s93 = sphi 0, %s93
      %s95 = sphi 0, %s93
      %s96 = sphi 0, %s95
      %s110 = sphi 0, %s96
      %s116 = sphi 0, %s118
      %s119 = sphi 0, %s116
      %s120 = sphi 0, %s119
      %s136 = sphi 0, %s120
    $region4: #{tpu_custom_call.1} parent=1 // loop_header_branch
      %20 = sbr.rel (%p18) target = $region8
    $region5: #{tpu_custom_call.1} parent=1 // loop_body
      %s22 = ssub.s32 %s17, 1
      %s23 = ssub.s32 %s17, 2
      %s24 = sadd.s32 %s17, 1
      %s25 = ssub.s32 %s17, %s24
      %p26 = scmp.eq.s32.totalorder %s25, 0
      %s28 = sadd.s32 %s27, 1
      %s29 = scalar_select %p26, %s27, %s28
      %p32 = pneg %p26
      %p33 = scmp.eq.s32.totalorder %s17, 1
      %p34 = por %p32, %p33
      %p35 = scmp.ne.s32.totalorder %s27, %s30
      %p36 = scmp.eq.s32.totalorder %s17, 0
      %p37 = por %p35, %p36
      %p38 = scmp.ne.s32.totalorder %s27, %s30
      %p39 = scmp.eq.s32.totalorder %s22, 1
      %p40 = por %p38, %p39
      %p41 = scmp.ne.s32.totalorder %s30, %s31
      %p42 = scmp.eq.s32.totalorder %s22, 0
      %p43 = por %p41, %p42
      %p44 = scmp.ne.s32.totalorder %s30, %s31
      %p45 = scmp.eq.s32.totalorder %s23, 1
      %p46 = por %p44, %p45
      %p48 = scmp.ne.s32.totalorder %s31, %s47
      %p49 = scmp.eq.s32.totalorder %s23, 0
      %p50 = por %p48, %p49
      %s52 = sadd.s32 %s51, 1
      %p55 = scmp.eq.s32.totalorder %s17, 1
      %p56 = scmp.ne.s32.totalorder %s51, %s53
      %p57 = scmp.eq.s32.totalorder %s17, 0
      %p58 = por %p56, %p57
      %p59 = scmp.ne.s32.totalorder %s51, %s53
      %p60 = scmp.eq.s32.totalorder %s22, 1
      %p61 = por %p59, %p60
      %p62 = scmp.ne.s32.totalorder %s53, %s54
      %p63 = scmp.eq.s32.totalorder %s22, 0
      %p64 = por %p62, %p63
      %p65 = scmp.ne.s32.totalorder %s53, %s54
      %p66 = scmp.eq.s32.totalorder %s23, 1
      %p67 = por %p65, %p66
      %p69 = scmp.ne.s32.totalorder %s54, %s68
      %p70 = scmp.eq.s32.totalorder %s23, 0
      %p71 = por %p69, %p70
      %s73 = sadd.s32 %s72, 1
      %p76 = scmp.eq.s32.totalorder %s17, 1
      %p77 = scmp.ne.s32.totalorder %s72, %s74
      %p78 = scmp.eq.s32.totalorder %s17, 0
      %p79 = por %p77, %p78
      %p80 = scmp.ne.s32.totalorder %s72, %s74
      %p81 = scmp.eq.s32.totalorder %s22, 1
      %p82 = por %p80, %p81
      %p83 = scmp.ne.s32.totalorder %s74, %s75
      %p84 = scmp.eq.s32.totalorder %s22, 0
      %p85 = por %p83, %p84
      %p86 = scmp.ne.s32.totalorder %s74, %s75
      %p87 = scmp.eq.s32.totalorder %s23, 1
      %p88 = por %p86, %p87
      %p90 = scmp.ne.s32.totalorder %s75, %s89
      %p91 = scmp.eq.s32.totalorder %s23, 0
      %p92 = por %p90, %p91
      %s94 = sadd.s32 %s93, 1
      %p97 = scmp.eq.s32.totalorder %s17, 1
      %p98 = scmp.ne.s32.totalorder %s93, %s95
      %p99 = scmp.eq.s32.totalorder %s17, 0
      %p100 = por %p98, %p99
      %p101 = scmp.ne.s32.totalorder %s93, %s95
      %p102 = scmp.eq.s32.totalorder %s22, 1
      %p103 = por %p101, %p102
      %p104 = scmp.ne.s32.totalorder %s95, %s96
      %p105 = scmp.eq.s32.totalorder %s22, 0
      %p106 = por %p104, %p105
      %p107 = scmp.ne.s32.totalorder %s95, %s96
      %p108 = scmp.eq.s32.totalorder %s23, 1
      %p109 = por %p107, %p108
      %p111 = scmp.ne.s32.totalorder %s96, %s110
      %p112 = scmp.eq.s32.totalorder %s23, 0
      %p113 = por %p111, %p112
      %s114 = ssub.s32 %s17, %s24
      %p115 = scmp.eq.s32.totalorder %s114, 0
      %s117 = sadd.s32 %s116, 1
      %s118 = scalar_select %p115, %s116, %s117
      %p121 = pneg %p115
      %p122 = scmp.eq.s32.totalorder %s17, 1
      %p123 = por %p121, %p122
      %p124 = scmp.ne.s32.totalorder %s116, %s119
      %p125 = scmp.eq.s32.totalorder %s17, 0
      %p126 = por %p124, %p125
      %p127 = scmp.ne.s32.totalorder %s116, %s119
      %p128 = scmp.eq.s32.totalorder %s22, 1
      %p129 = por %p127, %p128
      %p130 = scmp.ne.s32.totalorder %s119, %s120
      %p131 = scmp.eq.s32.totalorder %s22, 0
      %p132 = por %p130, %p131
      %p133 = scmp.ne.s32.totalorder %s119, %s120
      %p134 = scmp.eq.s32.totalorder %s23, 1
      %p135 = por %p133, %p134
      %p137 = scmp.ne.s32.totalorder %s120, %s136
      %p138 = scmp.eq.s32.totalorder %s23, 0
      %p139 = por %p137, %p138
      %p140 = scmp.le.s32.totalorder 1, %s17
      %p141 = scmp.lt.s32.totalorder %s17, 3
      %p142 = pnand %p140, %p141
      %p143 = pneg %p142
      // Predicated region
      $region9: #{tpu_custom_call.1} parent=5 // pred_check
        _
      $region10: #{tpu_custom_call.1} parent=5 // pred_check_branch
        %145 = sbr.rel (%p142) target = $region12
      $region11: #{tpu_custom_call.1} parent=5 // pred_region
        %s146 = ssub.s32 %s17, 1
        // Predicated region
        $region13: #{tpu_custom_call.1} parent=11 // pred_check
          %p147 = pneg %p64
        $region14: #{tpu_custom_call.1} parent=11 // pred_check_branch
          %149 = sbr.rel (%p147) target = $region16
        $region15: #{tpu_custom_call.1} parent=11 // pred_region
          _
        $region16: #{tpu_custom_call.1} parent=11 // pred_fallthru
          _
        // Predicated region
        $region17: #{tpu_custom_call.1} parent=11 // pred_check
          %p150 = pneg %p85
        $region18: #{tpu_custom_call.1} parent=11 // pred_check_branch
          %152 = sbr.rel (%p150) target = $region20
        $region19: #{tpu_custom_call.1} parent=11 // pred_region
          _
        $region20: #{tpu_custom_call.1} parent=11 // pred_fallthru
          _
        // Predicated region
        $region21: #{tpu_custom_call.1} parent=11 // pred_check
          %p153 = pneg %p106
        $region22: #{tpu_custom_call.1} parent=11 // pred_check_branch
          %155 = sbr.rel (%p153) target = $region24
        $region23: #{tpu_custom_call.1} parent=11 // pred_region
          %157 = vsyncadd [#allocation6], 0
          %s158 = sshll.u32 %s3, 4
          %s159 = int_to_ptr.hbm [resolvable:$true] %s158
          %s160 = sshll.u32 [#allocation5], 4
          %s161 = int_to_ptr.vmem [resolvable:$true] %s160
          %166 = dma.hbm_to_vmem [thread:$0]  %s159, 8192, %s161, [#allocation6], 128, 128, 8
        $region24: #{tpu_custom_call.1} parent=11 // pred_fallthru
          _
      $region12: #{tpu_custom_call.1} parent=5 // pred_fallthru
        _
      %p167 = scmp.lt.s32.totalorder %s17, 2
      // Predicated region
      $region25: #{tpu_custom_call.1} parent=5 // pred_check
        %p168 = pneg %p167
      $region26: #{tpu_custom_call.1} parent=5 // pred_check_branch
        %170 = sbr.rel (%p168) target = $region28
      $region27: #{tpu_custom_call.1} parent=5 // pred_region
        // Predicated region
        $region29: #{tpu_custom_call.1} parent=27 // pred_check
          %p171 = pneg %p37
        $region30: #{tpu_custom_call.1} parent=27 // pred_check_branch
          %173 = sbr.rel (%p171) target = $region32
        $region31: #{tpu_custom_call.1} parent=27 // pred_region
          %s174 = sand.u32 %s27, 1
          %s175 = scalar_lea.sflag [#allocation3], %s174
          %s176 = sand.u32 %s27, 1
          %s177 = smul.addr %s176, 64
          %s178 = scalar_lea.vmem [#allocation2], %s177
          %180 = vsyncadd %s175, 0
          %s181 = smul.addr %s17, 8
          %s182 = smul.addr %s181, 8
          %s183 = scalar_lea.hbm %s0, %s182
          %s184 = sshll.u32 %s183, 4
          %s185 = int_to_ptr.hbm [resolvable:$true] %s184
          %s186 = sshll.u32 %s178, 4
          %s187 = int_to_ptr.vmem [resolvable:$true] %s186
          %192 = dma.hbm_to_vmem [thread:$0]  %s185, 1024, %s187, %s175, 256, 256, 16
        $region32: #{tpu_custom_call.1} parent=27 // pred_fallthru
          _
      $region28: #{tpu_custom_call.1} parent=5 // pred_fallthru
        _
      %p193 = scmp.le.s32.totalorder 1, %s17
      %p194 = scmp.lt.s32.totalorder %s17, 3
      %p195 = pnand %p193, %p194
      %p196 = pneg %p195
      // Predicated region
      $region33: #{tpu_custom_call.1} parent=5 // pred_check
        _
      $region34: #{tpu_custom_call.1} parent=5 // pred_check_branch
        %198 = sbr.rel (%p195) target = $region36
      $region35: #{tpu_custom_call.1} parent=5 // pred_region
        %s199 = ssub.s32 %s17, 1
        %s200 = sand.u32 %s30, 1
        %s201 = scalar_lea.sflag [#allocation3], %s200
        %s202 = sand.u32 %s30, 1
        %s203 = smul.addr %s202, 64
        %s204 = scalar_lea.vmem [#allocation2], %s203
        // Predicated region
        $region37: #{tpu_custom_call.1} parent=35 // pred_check
          %p205 = pneg %p43
        $region38: #{tpu_custom_call.1} parent=35 // pred_check_branch
          %207 = sbr.rel (%p205) target = $region40
        $region39: #{tpu_custom_call.1} parent=35 // pred_region
          %209 = dma.done %s201, 1024
        $region40: #{tpu_custom_call.1} parent=35 // pred_fallthru
          _
        // Predicated region
        $region41: #{tpu_custom_call.1} parent=35 // pred_check
          %p210 = pneg %p106
        $region42: #{tpu_custom_call.1} parent=35 // pred_check_branch
          %212 = sbr.rel (%p210) target = $region44
        $region43: #{tpu_custom_call.1} parent=35 // pred_region
          %214 = dma.done [#allocation6], 8192
        $region44: #{tpu_custom_call.1} parent=35 // pred_fallthru
          _
        %s215 = sand.u32 %s30, 1
        %s216 = scalar_lea.sflag [#allocation3], %s215
        %s217 = sand.u32 %s30, 1
        %s218 = smul.addr %s217, 64
        %s219 = scalar_lea.vmem [#allocation2], %s218
        %p220 = pneg %p43
        %p221 = pneg %p40
        %p222 = pneg %p64
        %p223 = pneg %p61
        %p224 = pneg %p85
        %p225 = pneg %p82
        %p226 = pneg %p106
        %p227 = pneg %p103
        %p228 = pneg %p132
        %p229 = pneg %p129
        %s230 = sand.u32 %s119, 1
        %s231 = scalar_lea.sflag [#allocation4], %s230
        %s232 = sand.u32 %s119, 1
        %s233 = smul.addr %s232, 64
        %s234 = scalar_lea.vmem [#allocation7], %s233
        %v235 = vld [vmem:[%s204] sm:$0xff]
        %v236 = vld [vmem:[%s204 + $0x8] sm:$0xff]
        %v237 = vld [vmem:[%s204 + $0x10] sm:$0xff]
        %v238 = vld [vmem:[%s204 + $0x18] sm:$0xff]
        %v239 = vld [vmem:[%s204 + $0x20] sm:$0xff]
        %v240 = vld [vmem:[%s204 + $0x28] sm:$0xff]
        %v241 = vld [vmem:[%s204 + $0x30] sm:$0xff]
        %v242 = vld [vmem:[%s204 + $0x38] sm:$0xff]
        %v243 = vadd.f32 %v235, %v236
        %244 = vadd.xlane.f32.xlu0 %v243
        %v245 = vpop.xlane.xlu0 %244
        %v246 = vadd.f32 %v237, %v238
        %247 = vadd.xlane.f32.xlu0 %v246
        %v248 = vpop.xlane.xlu0 %247
        %v249 = vadd.f32 %v239, %v240
        %250 = vadd.xlane.f32.xlu0 %v249
        %v251 = vpop.xlane.xlu0 %250
        %v252 = vadd.f32 %v241, %v242
        %253 = vadd.xlane.f32.xlu0 %v252
        %v254 = vpop.xlane.xlu0 %253
        %v255 = vmul.f32 %v245, 0.00390625
        %v256 = vmul.f32 %v248, 0.00390625
        %v257 = vmul.f32 %v251, 0.00390625
        %v258 = vmul.f32 %v254, 0.00390625
        %v259 = vmax.f32 %v235, %v236
        %260 = vmax.xlane.f32.xlu0 %v259
        %v261 = vpop.xlane.xlu0 %260
        %v262 = vmax.f32 %v237, %v238
        %263 = vmax.xlane.f32.xlu0 %v262
        %v264 = vpop.xlane.xlu0 %263
        %v265 = vmax.f32 %v239, %v240
        %266 = vmax.xlane.f32.xlu0 %v265
        %v267 = vpop.xlane.xlu0 %266
        %v268 = vmax.f32 %v241, %v242
        %269 = vmax.xlane.f32.xlu0 %v268
        %v270 = vpop.xlane.xlu0 %269
        %v275 = vlaneseq
        %v276 = vand.u32 %v275, 127
        %v277 = vperm.slane %v255, %v276
        %v278 = vadd.s32 %v276, 4294967288
        %v279 = vperm.slane %v256, %v278
        %vm280 = vcmask 130112
        %v281 = vsel %vm280, %v279, %v277
        %v282 = vadd.s32 %v276, 4294967280
        %v283 = vperm.slane %v257, %v282
        %vm284 = vcmask 195712
        %v285 = vsel %vm284, %v283, %v281
        %v286 = vadd.s32 %v276, 4294967272
        %v287 = vperm.slane %v258, %v286
        %vm288 = vcmask 261312
        %v289 = vsel %vm288, %v287, %v285
        %v295 = vperm.slane %v261, %v276
        %v296 = vperm.slane %v264, %v278
        %v297 = vsel %vm280, %v296, %v295
        %v298 = vperm.slane %v267, %v282
        %v299 = vsel %vm284, %v298, %v297
        %v300 = vperm.slane %v270, %v286
        %v301 = vsel %vm288, %v300, %v299
        %vm303 = vcmask 1040384
        %v304 = vsel %vm303, %v289, %v301
        %v305 = vld [vmem:[%s1] sm:$0xff]
        %v306 = vld [vmem:[%s1 + $0x8] sm:$0xff]
        %v307 = vld [vmem:[%s1 + $0x10] sm:$0xff]
        %v308 = vld [vmem:[%s1 + $0x18] sm:$0xff]
        %v309 = vld [vmem:[%s2] sm:$0xf]
        %vm310 = vcmask 261120
        %v312 = vsel %vm310, %v304, 0
        %314 = vmatpush.msra.mxu0 0.0
        %315 = vmatpush.msra.mxu0 0.0
        %316 = vmatpush.msra.mxu0 0.0
        %317 = vmatpush.msra.mxu0 0.0
        %318 = vmatpush.msra.mxu0 0.0
        %319 = vmatpush.msra.mxu0 0.0
        %320 = vmatpush.msra.mxu0 0.0
        %321 = vmatpush.msra.mxu0 0.0
        %322 = vmatpush.msra.mxu0 0.0
        %323 = vmatpush.msra.mxu0 0.0
        %324 = vmatpush.msra.mxu0 0.0
        %325 = vmatpush.msra.mxu0 0.0
        %326 = vmatpush.msra.mxu0 %v308
        %327 = vmatpush.msra.mxu0 %v307
        %328 = vmatpush.msra.mxu0 %v306
        %329 = vmatpush.msra.mxu0 %v305
        %330 = vmatmul.f32.gmra.mxu0 %v312
        %v331 = vpop.f32.mrf.mxu0
        %v332 = vadd.f32 0.0, %v331
        %333 = vdwg.mxu0
        %v334 = vmax.f32 %v332, 0.0
        %vm335 = vcmask 31744
        %v337 = vsel %vm335, %v334, 0
        %vm339 = vcmask 1043456
        %v341 = vsel %vm339, %v309, 0
        %343 = vmatpush.msra.mxu0 0.0
        %344 = vmatpush.msra.mxu0 0.0
        %345 = vmatpush.msra.mxu0 0.0
        %346 = vmatpush.msra.mxu0 0.0
        %347 = vmatpush.msra.mxu0 0.0
        %348 = vmatpush.msra.mxu0 0.0
        %349 = vmatpush.msra.mxu0 0.0
        %350 = vmatpush.msra.mxu0 0.0
        %351 = vmatpush.msra.mxu0 0.0
        %352 = vmatpush.msra.mxu0 0.0
        %353 = vmatpush.msra.mxu0 0.0
        %354 = vmatpush.msra.mxu0 0.0
        %355 = vmatpush.msra.mxu0 0.0
        %356 = vmatpush.msra.mxu0 0.0
        %357 = vmatpush.msra.mxu0 0.0
        %358 = vmatpush.msra.mxu0 %v341
        %359 = vmatmul.f32.gmra.mxu0 %v337
        %v360 = vpop.f32.mrf.mxu0
        %v361 = vadd.f32 0.0, %v360
        %362 = vdwg.mxu0
        %v364 = vrot.slane %v361, 1
        %v366 = vadd.f32 %v361, %v364
        %v367 = vxor.u32 %v366, 2147483648
        %v368 = vmul.f32 %v367, 1.442695
        %v369 = vpow.pop %v368
        %v370 = vadd.f32 %v369, 1.0
        %v371 = vrcp.pop %v370
        %v372 = vmul.f32 %v370, %v371
        %v373 = vsub.f32 1.0, %v372
        %v374 = vmul.f32 %v371, %v373
        %v375 = vadd.f32 %v371, %v374
        %vm376 = vweird.f32 %v370
        %vm377 = vweird.f32 %v371
        %vm378 = vmor %vm376, %vm377
        %v379 = vsel %vm378, %v371, %v375
        %v380 = vand.u32 2147483647, %v370
        %vm381 = vcmp.eq.f32.partialorder %v380, 8.507059e+37
        %v382 = vand.u32 %v370, 2147483648
        %v383 = vor.u32 1.1754944e-38, %v382
        %v384 = vsel %vm381, %v383, %v379
        %v385 = vmul.f32 1.0, %v384
        %v386 = vperm.slane %v385, 0
        %v387 = vlaneseq
        %v388 = vshrl.u32 %v387, 7
        %390 = vset.pattern.permute.xlu0 %v388
        %391 = vperm.xlu0 %390, %v386
        %v392 = vpop.permute.xlu0 %391
        %v393 = vlaneseq
        %v394 = vshrl.u32 %v393, 7
        %v395 = vadd.s32 %v394, 8
        %396 = vset.pattern.permute.xlu0 %v395
        %397 = vperm.xlu0 %396, %v386
        %v398 = vpop.permute.xlu0 %397
        %v399 = vlaneseq
        %v400 = vshrl.u32 %v399, 7
        %v401 = vadd.s32 %v400, 16
        %402 = vset.pattern.permute.xlu0 %v401
        %403 = vperm.xlu0 %402, %v386
        %v404 = vpop.permute.xlu0 %403
        %v405 = vlaneseq
        %v406 = vshrl.u32 %v405, 7
        %v407 = vadd.s32 %v406, 24
        %408 = vset.pattern.permute.xlu0 %v407
        %409 = vperm.xlu0 %408, %v386
        %v410 = vpop.permute.xlu0 %409
        %v411 = vmul.f32 %v235, %v392
        %v412 = vmul.f32 %v236, %v392
        %v413 = vmul.f32 %v237, %v398
        %v414 = vmul.f32 %v238, %v398
        %v415 = vmul.f32 %v239, %v404
        %v416 = vmul.f32 %v240, %v404
        %v417 = vmul.f32 %v241, %v410
        %v418 = vmul.f32 %v242, %v410
        %v419 = vadd.f32 %v411, %v413
        %v420 = vadd.f32 %v419, %v415
        %v421 = vadd.f32 %v420, %v417
        %v422 = vrot.slane %v421, 4
        %v423 = vadd.f32 %v421, %v422
        %v424 = vrot.slane %v423, 2
        %v425 = vadd.f32 %v423, %v424
        %v426 = vrot.slane %v425, 1
        %v427 = vadd.f32 %v425, %v426
        %v428 = vadd.f32 %v412, %v414
        %v429 = vadd.f32 %v428, %v416
        %v430 = vadd.f32 %v429, %v418
        %v431 = vrot.slane %v430, 4
        %v432 = vadd.f32 %v430, %v431
        %v433 = vrot.slane %v432, 2
        %v434 = vadd.f32 %v432, %v433
        %v435 = vrot.slane %v434, 1
        %v436 = vadd.f32 %v434, %v435
        %v437 = vmul.f32 %v427, 0.03125
        %v438 = vmul.f32 %v436, 0.03125
        %v439 = vmax.f32 %v411, %v415
        %v440 = vmax.f32 %v413, %v417
        %v441 = vmax.f32 %v439, %v440
        %v442 = vrot.slane %v441, 4
        %v443 = vmax.f32 %v441, %v442
        %v444 = vrot.slane %v443, 2
        %v445 = vmax.f32 %v443, %v444
        %v446 = vrot.slane %v445, 1
        %v447 = vmax.f32 %v445, %v446
        %v448 = vmax.f32 %v412, %v416
        %v449 = vmax.f32 %v414, %v418
        %v450 = vmax.f32 %v448, %v449
        %v451 = vrot.slane %v450, 4
        %v452 = vmax.f32 %v450, %v451
        %v453 = vrot.slane %v452, 2
        %v454 = vmax.f32 %v452, %v453
        %v455 = vrot.slane %v454, 1
        %v456 = vmax.f32 %v454, %v455
        %v457 = vpack.c.bf16 %v437, %v437
        %v458 = vpack.c.bf16 %v438, %v438
        %v459 = vpack.c.bf16 %v447, %v447
        %v460 = vpack.c.bf16 %v456, %v456
        %v461 = vld [vmem:[#allocation5] sm:$0xff]
        %v462 = vld [vmem:[#allocation5 + $0x8] sm:$0xff]
        %v463 = vld [vmem:[#allocation5 + $0x10] sm:$0xff]
        %v464 = vld [vmem:[#allocation5 + $0x18] sm:$0xff]
        %v465 = vld [vmem:[#allocation5 + $0x20] sm:$0xff]
        %v466 = vld [vmem:[#allocation5 + $0x28] sm:$0xff]
        %v467 = vld [vmem:[#allocation5 + $0x30] sm:$0xff]
        %v468 = vld [vmem:[#allocation5 + $0x38] sm:$0xff]
        %v469 = vld [vmem:[#allocation5 + $0x40] sm:$0xff]
        %v470 = vld [vmem:[#allocation5 + $0x48] sm:$0xff]
        %v471 = vld [vmem:[#allocation5 + $0x50] sm:$0xff]
        %v472 = vld [vmem:[#allocation5 + $0x58] sm:$0xff]
        %v473 = vld [vmem:[#allocation5 + $0x60] sm:$0xff]
        %v474 = vld [vmem:[#allocation5 + $0x68] sm:$0xff]
        %v475 = vld [vmem:[#allocation5 + $0x70] sm:$0xff]
        %v476 = vld [vmem:[#allocation5 + $0x78] sm:$0xff]
        %v477 = vld [vmem:[#allocation5 + $0x80] sm:$0xff]
        %v478 = vld [vmem:[#allocation5 + $0x88] sm:$0xff]
        %v479 = vld [vmem:[#allocation5 + $0x90] sm:$0xff]
        %v480 = vld [vmem:[#allocation5 + $0x98] sm:$0xff]
        %v481 = vld [vmem:[#allocation5 + $0xa0] sm:$0xff]
        %v482 = vld [vmem:[#allocation5 + $0xa8] sm:$0xff]
        %v483 = vld [vmem:[#allocation5 + $0xb0] sm:$0xff]
        %v484 = vld [vmem:[#allocation5 + $0xb8] sm:$0xff]
        %v485 = vld [vmem:[#allocation5 + $0xc0] sm:$0xff]
        %v486 = vld [vmem:[#allocation5 + $0xc8] sm:$0xff]
        %v487 = vld [vmem:[#allocation5 + $0xd0] sm:$0xff]
        %v488 = vld [vmem:[#allocation5 + $0xd8] sm:$0xff]
        %v489 = vld [vmem:[#allocation5 + $0xe0] sm:$0xff]
        %v490 = vld [vmem:[#allocation5 + $0xe8] sm:$0xff]
        %v491 = vld [vmem:[#allocation5 + $0xf0] sm:$0xff]
        %v492 = vld [vmem:[#allocation5 + $0xf8] sm:$0xff]
        %v493 = vld [vmem:[#allocation5 + $0x100] sm:$0xff]
        %v494 = vld [vmem:[#allocation5 + $0x108] sm:$0xff]
        %v495 = vld [vmem:[#allocation5 + $0x110] sm:$0xff]
        %v496 = vld [vmem:[#allocation5 + $0x118] sm:$0xff]
        %v497 = vld [vmem:[#allocation5 + $0x120] sm:$0xff]
        %v498 = vld [vmem:[#allocation5 + $0x128] sm:$0xff]
        %v499 = vld [vmem:[#allocation5 + $0x130] sm:$0xff]
        %v500 = vld [vmem:[#allocation5 + $0x138] sm:$0xff]
        %v501 = vld [vmem:[#allocation5 + $0x140] sm:$0xff]
        %v502 = vld [vmem:[#allocation5 + $0x148] sm:$0xff]
        %v503 = vld [vmem:[#allocation5 + $0x150] sm:$0xff]
        %v504 = vld [vmem:[#allocation5 + $0x158] sm:$0xff]
        %v505 = vld [vmem:[#allocation5 + $0x160] sm:$0xff]
        %v506 = vld [vmem:[#allocation5 + $0x168] sm:$0xff]
        %v507 = vld [vmem:[#allocation5 + $0x170] sm:$0xff]
        %v508 = vld [vmem:[#allocation5 + $0x178] sm:$0xff]
        %v509 = vld [vmem:[#allocation5 + $0x180] sm:$0xff]
        %v510 = vld [vmem:[#allocation5 + $0x188] sm:$0xff]
        %v511 = vld [vmem:[#allocation5 + $0x190] sm:$0xff]
        %v512 = vld [vmem:[#allocation5 + $0x198] sm:$0xff]
        %v513 = vld [vmem:[#allocation5 + $0x1a0] sm:$0xff]
        %v514 = vld [vmem:[#allocation5 + $0x1a8] sm:$0xff]
        %v515 = vld [vmem:[#allocation5 + $0x1b0] sm:$0xff]
        %v516 = vld [vmem:[#allocation5 + $0x1b8] sm:$0xff]
        %v517 = vld [vmem:[#allocation5 + $0x1c0] sm:$0xff]
        %v518 = vld [vmem:[#allocation5 + $0x1c8] sm:$0xff]
        %v519 = vld [vmem:[#allocation5 + $0x1d0] sm:$0xff]
        %v520 = vld [vmem:[#allocation5 + $0x1d8] sm:$0xff]
        %v521 = vld [vmem:[#allocation5 + $0x1e0] sm:$0xff]
        %v522 = vld [vmem:[#allocation5 + $0x1e8] sm:$0xff]
        %v523 = vld [vmem:[#allocation5 + $0x1f0] sm:$0xff]
        %v524 = vld [vmem:[#allocation5 + $0x1f8] sm:$0xff]
        %v589 = vunpack.c.l.b16 %v461
        %v590 = vunpack.c.h.b16 %v461
        %v591 = vunpack.c.l.b16 %v462
        %v592 = vunpack.c.h.b16 %v462
        %v593 = vunpack.c.l.b16 %v463
        %v594 = vunpack.c.h.b16 %v463
        %v595 = vunpack.c.l.b16 %v464
        %v596 = vunpack.c.h.b16 %v464
        %v597 = vunpack.c.l.b16 %v465
        %v598 = vunpack.c.h.b16 %v465
        %v599 = vunpack.c.l.b16 %v466
        %v600 = vunpack.c.h.b16 %v466
        %v601 = vunpack.c.l.b16 %v467
        %v602 = vunpack.c.h.b16 %v467
        %v603 = vunpack.c.l.b16 %v468
        %v604 = vunpack.c.h.b16 %v468
        %v605 = vunpack.c.l.b16 %v469
        %v606 = vunpack.c.h.b16 %v469
        %v607 = vunpack.c.l.b16 %v470
        %v608 = vunpack.c.h.b16 %v470
        %v609 = vunpack.c.l.b16 %v471
        %v610 = vunpack.c.h.b16 %v471
        %v611 = vunpack.c.l.b16 %v472
        %v612 = vunpack.c.h.b16 %v472
        %v613 = vunpack.c.l.b16 %v473
        %v614 = vunpack.c.h.b16 %v473
        %v615 = vunpack.c.l.b16 %v474
        %v616 = vunpack.c.h.b16 %v474
        %v617 = vunpack.c.l.b16 %v475
        %v618 = vunpack.c.h.b16 %v475
        %v619 = vunpack.c.l.b16 %v476
        %v620 = vunpack.c.h.b16 %v476
        %v621 = vunpack.c.l.b16 %v477
        %v622 = vunpack.c.h.b16 %v477
        %v623 = vunpack.c.l.b16 %v478
        %v624 = vunpack.c.h.b16 %v478
        %v625 = vunpack.c.l.b16 %v479
        %v626 = vunpack.c.h.b16 %v479
        %v627 = vunpack.c.l.b16 %v480
        %v628 = vunpack.c.h.b16 %v480
        %v629 = vunpack.c.l.b16 %v481
        %v630 = vunpack.c.h.b16 %v481
        %v631 = vunpack.c.l.b16 %v482
        %v632 = vunpack.c.h.b16 %v482
        %v633 = vunpack.c.l.b16 %v483
        %v634 = vunpack.c.h.b16 %v483
        %v635 = vunpack.c.l.b16 %v484
        %v636 = vunpack.c.h.b16 %v484
        %v637 = vunpack.c.l.b16 %v485
        %v638 = vunpack.c.h.b16 %v485
        %v639 = vunpack.c.l.b16 %v486
        %v640 = vunpack.c.h.b16 %v486
        %v641 = vunpack.c.l.b16 %v487
        %v642 = vunpack.c.h.b16 %v487
        %v643 = vunpack.c.l.b16 %v488
        %v644 = vunpack.c.h.b16 %v488
        %v645 = vunpack.c.l.b16 %v489
        %v646 = vunpack.c.h.b16 %v489
        %v647 = vunpack.c.l.b16 %v490
        %v648 = vunpack.c.h.b16 %v490
        %v649 = vunpack.c.l.b16 %v491
        %v650 = vunpack.c.h.b16 %v491
        %v651 = vunpack.c.l.b16 %v492
        %v652 = vunpack.c.h.b16 %v492
        %v653 = vunpack.c.l.b16 %v493
        %v654 = vunpack.c.h.b16 %v493
        %v655 = vunpack.c.l.b16 %v494
        %v656 = vunpack.c.h.b16 %v494
        %v657 = vunpack.c.l.b16 %v495
        %v658 = vunpack.c.h.b16 %v495
        %v659 = vunpack.c.l.b16 %v496
        %v660 = vunpack.c.h.b16 %v496
        %v661 = vunpack.c.l.b16 %v497
        %v662 = vunpack.c.h.b16 %v497
        %v663 = vunpack.c.l.b16 %v498
        %v664 = vunpack.c.h.b16 %v498
        %v665 = vunpack.c.l.b16 %v499
        %v666 = vunpack.c.h.b16 %v499
        %v667 = vunpack.c.l.b16 %v500
        %v668 = vunpack.c.h.b16 %v500
        %v669 = vunpack.c.l.b16 %v501
        %v670 = vunpack.c.h.b16 %v501
        %v671 = vunpack.c.l.b16 %v502
        %v672 = vunpack.c.h.b16 %v502
        %v673 = vunpack.c.l.b16 %v503
        %v674 = vunpack.c.h.b16 %v503
        %v675 = vunpack.c.l.b16 %v504
        %v676 = vunpack.c.h.b16 %v504
        %v677 = vunpack.c.l.b16 %v505
        %v678 = vunpack.c.h.b16 %v505
        %v679 = vunpack.c.l.b16 %v506
        %v680 = vunpack.c.h.b16 %v506
        %v681 = vunpack.c.l.b16 %v507
        %v682 = vunpack.c.h.b16 %v507
        %v683 = vunpack.c.l.b16 %v508
        %v684 = vunpack.c.h.b16 %v508
        %v685 = vunpack.c.l.b16 %v509
        %v686 = vunpack.c.h.b16 %v509
        %v687 = vunpack.c.l.b16 %v510
        %v688 = vunpack.c.h.b16 %v510
        %v689 = vunpack.c.l.b16 %v511
        %v690 = vunpack.c.h.b16 %v511
        %v691 = vunpack.c.l.b16 %v512
        %v692 = vunpack.c.h.b16 %v512
        %v693 = vunpack.c.l.b16 %v513
        %v694 = vunpack.c.h.b16 %v513
        %v695 = vunpack.c.l.b16 %v514
        %v696 = vunpack.c.h.b16 %v514
        %v697 = vunpack.c.l.b16 %v515
        %v698 = vunpack.c.h.b16 %v515
        %v699 = vunpack.c.l.b16 %v516
        %v700 = vunpack.c.h.b16 %v516
        %v701 = vunpack.c.l.b16 %v517
        %v702 = vunpack.c.h.b16 %v517
        %v703 = vunpack.c.l.b16 %v518
        %v704 = vunpack.c.h.b16 %v518
        %v705 = vunpack.c.l.b16 %v519
        %v706 = vunpack.c.h.b16 %v519
        %v707 = vunpack.c.l.b16 %v520
        %v708 = vunpack.c.h.b16 %v520
        %v709 = vunpack.c.l.b16 %v521
        %v710 = vunpack.c.h.b16 %v521
        %v711 = vunpack.c.l.b16 %v522
        %v712 = vunpack.c.h.b16 %v522
        %v713 = vunpack.c.l.b16 %v523
        %v714 = vunpack.c.h.b16 %v523
        %v715 = vunpack.c.l.b16 %v524
        %v716 = vunpack.c.h.b16 %v524
        %v717 = vpack.c.b16 %v591, %v589
        %v718 = vpack.c.b16 %v592, %v590
        %v719 = vpack.c.b16 %v595, %v593
        %v720 = vpack.c.b16 %v596, %v594
        %v721 = vpack.c.b16 %v599, %v597
        %v722 = vpack.c.b16 %v600, %v598
        %v723 = vpack.c.b16 %v603, %v601
        %v724 = vpack.c.b16 %v604, %v602
        %v725 = vpack.c.b16 %v607, %v605
        %v726 = vpack.c.b16 %v608, %v606
        %v727 = vpack.c.b16 %v611, %v609
        %v728 = vpack.c.b16 %v612, %v610
        %v729 = vpack.c.b16 %v615, %v613
        %v730 = vpack.c.b16 %v616, %v614
        %v731 = vpack.c.b16 %v619, %v617
        %v732 = vpack.c.b16 %v620, %v618
        %v733 = vpack.c.b16 %v623, %v621
        %v734 = vpack.c.b16 %v624, %v622
        %v735 = vpack.c.b16 %v627, %v625
        %v736 = vpack.c.b16 %v628, %v626
        %v737 = vpack.c.b16 %v631, %v629
        %v738 = vpack.c.b16 %v632, %v630
        %v739 = vpack.c.b16 %v635, %v633
        %v740 = vpack.c.b16 %v636, %v634
        %v741 = vpack.c.b16 %v639, %v637
        %v742 = vpack.c.b16 %v640, %v638
        %v743 = vpack.c.b16 %v643, %v641
        %v744 = vpack.c.b16 %v644, %v642
        %v745 = vpack.c.b16 %v647, %v645
        %v746 = vpack.c.b16 %v648, %v646
        %v747 = vpack.c.b16 %v651, %v649
        %v748 = vpack.c.b16 %v652, %v650
        %v749 = vpack.c.b16 %v655, %v653
        %v750 = vpack.c.b16 %v656, %v654
        %v751 = vpack.c.b16 %v659, %v657
        %v752 = vpack.c.b16 %v660, %v658
        %v753 = vpack.c.b16 %v663, %v661
        %v754 = vpack.c.b16 %v664, %v662
        %v755 = vpack.c.b16 %v667, %v665
        %v756 = vpack.c.b16 %v668, %v666
        %v757 = vpack.c.b16 %v671, %v669
        %v758 = vpack.c.b16 %v672, %v670
        %v759 = vpack.c.b16 %v675, %v673
        %v760 = vpack.c.b16 %v676, %v674
        %v761 = vpack.c.b16 %v679, %v677
        %v762 = vpack.c.b16 %v680, %v678
        %v763 = vpack.c.b16 %v683, %v681
        %v764 = vpack.c.b16 %v684, %v682
        %v765 = vpack.c.b16 %v687, %v685
        %v766 = vpack.c.b16 %v688, %v686
        %v767 = vpack.c.b16 %v691, %v689
        %v768 = vpack.c.b16 %v692, %v690
        %v769 = vpack.c.b16 %v695, %v693
        %v770 = vpack.c.b16 %v696, %v694
        %v771 = vpack.c.b16 %v699, %v697
        %v772 = vpack.c.b16 %v700, %v698
        %v773 = vpack.c.b16 %v703, %v701
        %v774 = vpack.c.b16 %v704, %v702
        %v775 = vpack.c.b16 %v707, %v705
        %v776 = vpack.c.b16 %v708, %v706
        %v777 = vpack.c.b16 %v711, %v709
        %v778 = vpack.c.b16 %v712, %v710
        %v779 = vpack.c.b16 %v715, %v713
        %v780 = vpack.c.b16 %v716, %v714
        %845 = vmatpush.bf16.msra.mxu0 %v731
        %846 = vmatpush.bf16.msra.mxu0 %v729
        %847 = vmatpush.bf16.msra.mxu0 %v727
        %848 = vmatpush.bf16.msra.mxu0 %v725
        %849 = vmatpush.bf16.msra.mxu0 %v723
        %850 = vmatpush.bf16.msra.mxu0 %v721
        %851 = vmatpush.bf16.msra.mxu0 %v719
        %852 = vmatpush.bf16.msra.mxu0 %v717
        %853 = vmatmul.bf16.gmra.mxu0 %v457
        %v854 = vpop.f32.mrf.mxu0
        %v855 = vadd.f32 0.0, %v854
        %v856 = vpop.f32.mrf.mxu0
        %857 = vdwg.mxu0
        %858 = vmatpush.bf16.msra.mxu0 %v747
        %859 = vmatpush.bf16.msra.mxu0 %v745
        %860 = vmatpush.bf16.msra.mxu0 %v743
        %861 = vmatpush.bf16.msra.mxu0 %v741
        %862 = vmatpush.bf16.msra.mxu0 %v739
        %863 = vmatpush.bf16.msra.mxu0 %v737
        %864 = vmatpush.bf16.msra.mxu0 %v735
        %865 = vmatpush.bf16.msra.mxu0 %v733
        %866 = vmatmul.bf16.gmra.mxu0 %v458
        %v867 = vpop.f32.mrf.mxu0
        %v868 = vadd.f32 %v855, %v867
        %v869 = vpop.f32.mrf.mxu0
        %870 = vdwg.mxu0
        %871 = vmatpush.bf16.msra.mxu0 %v763
        %872 = vmatpush.bf16.msra.mxu0 %v761
        %873 = vmatpush.bf16.msra.mxu0 %v759
        %874 = vmatpush.bf16.msra.mxu0 %v757
        %875 = vmatpush.bf16.msra.mxu0 %v755
        %876 = vmatpush.bf16.msra.mxu0 %v753
        %877 = vmatpush.bf16.msra.mxu0 %v751
        %878 = vmatpush.bf16.msra.mxu0 %v749
        %879 = vmatmul.bf16.gmra.mxu0 %v459
        %v880 = vpop.f32.mrf.mxu0
        %v881 = vadd.f32 %v868, %v880
        %v882 = vpop.f32.mrf.mxu0
        %883 = vdwg.mxu0
        %884 = vmatpush.bf16.msra.mxu0 %v779
        %885 = vmatpush.bf16.msra.mxu0 %v777
        %886 = vmatpush.bf16.msra.mxu0 %v775
        %887 = vmatpush.bf16.msra.mxu0 %v773
        %888 = vmatpush.bf16.msra.mxu0 %v771
        %889 = vmatpush.bf16.msra.mxu0 %v769
        %890 = vmatpush.bf16.msra.mxu0 %v767
        %891 = vmatpush.bf16.msra.mxu0 %v765
        %892 = vmatmul.bf16.gmra.mxu0 %v460
        %v893 = vpop.f32.mrf.mxu0
        %v894 = vadd.f32 %v881, %v893
        %v895 = vpop.f32.mrf.mxu0
        %896 = vdwg.mxu0
        %897 = vmatpush.bf16.msra.mxu0 %v732
        %898 = vmatpush.bf16.msra.mxu0 %v730
        %899 = vmatpush.bf16.msra.mxu0 %v728
        %900 = vmatpush.bf16.msra.mxu0 %v726
        %901 = vmatpush.bf16.msra.mxu0 %v724
        %902 = vmatpush.bf16.msra.mxu0 %v722
        %903 = vmatpush.bf16.msra.mxu0 %v720
        %904 = vmatpush.bf16.msra.mxu0 %v718
        %905 = vmatmul.bf16.gmra.mxu0 %v457
        %v906 = vpop.f32.mrf.mxu0
        %v907 = vadd.f32 0.0, %v906
        %v908 = vpop.f32.mrf.mxu0
        %909 = vdwg.mxu0
        %910 = vmatpush.bf16.msra.mxu0 %v748
        %911 = vmatpush.bf16.msra.mxu0 %v746
        %912 = vmatpush.bf16.msra.mxu0 %v744
        %913 = vmatpush.bf16.msra.mxu0 %v742
        %914 = vmatpush.bf16.msra.mxu0 %v740
        %915 = vmatpush.bf16.msra.mxu0 %v738
        %916 = vmatpush.bf16.msra.mxu0 %v736
        %917 = vmatpush.bf16.msra.mxu0 %v734
        %918 = vmatmul.bf16.gmra.mxu0 %v458
        %v919 = vpop.f32.mrf.mxu0
        %v920 = vadd.f32 %v907, %v919
        %v921 = vpop.f32.mrf.mxu0
        %922 = vdwg.mxu0
        %923 = vmatpush.bf16.msra.mxu0 %v764
        %924 = vmatpush.bf16.msra.mxu0 %v762
        %925 = vmatpush.bf16.msra.mxu0 %v760
        %926 = vmatpush.bf16.msra.mxu0 %v758
        %927 = vmatpush.bf16.msra.mxu0 %v756
        %928 = vmatpush.bf16.msra.mxu0 %v754
        %929 = vmatpush.bf16.msra.mxu0 %v752
        %930 = vmatpush.bf16.msra.mxu0 %v750
        %931 = vmatmul.bf16.gmra.mxu0 %v459
        %v932 = vpop.f32.mrf.mxu0
        %v933 = vadd.f32 %v920, %v932
        %v934 = vpop.f32.mrf.mxu0
        %935 = vdwg.mxu0
        %936 = vmatpush.bf16.msra.mxu0 %v780
        %937 = vmatpush.bf16.msra.mxu0 %v778
        %938 = vmatpush.bf16.msra.mxu0 %v776
        %939 = vmatpush.bf16.msra.mxu0 %v774
        %940 = vmatpush.bf16.msra.mxu0 %v772
        %941 = vmatpush.bf16.msra.mxu0 %v770
        %942 = vmatpush.bf16.msra.mxu0 %v768
        %943 = vmatpush.bf16.msra.mxu0 %v766
        %944 = vmatmul.bf16.gmra.mxu0 %v460
        %v945 = vpop.f32.mrf.mxu0
        %v946 = vadd.f32 %v933, %v945
        %v947 = vpop.f32.mrf.mxu0
        %948 = vdwg.mxu0
        %v949 = vxor.u32 %v894, 2147483648
        %v950 = vxor.u32 %v946, 2147483648
        %v951 = vmul.f32 %v949, 1.442695
        %v952 = vpow.pop %v951
        %v953 = vmul.f32 %v950, 1.442695
        %v954 = vpow.pop %v953
        %v955 = vadd.f32 %v952, 1.0
        %v956 = vadd.f32 %v954, 1.0
        %v957 = vrcp.pop %v955
        %v958 = vmul.f32 %v955, %v957
        %v959 = vsub.f32 1.0, %v958
        %v960 = vmul.f32 %v957, %v959
        %v961 = vadd.f32 %v957, %v960
        %vm962 = vweird.f32 %v955
        %vm963 = vweird.f32 %v957
        %vm964 = vmor %vm962, %vm963
        %v965 = vsel %vm964, %v957, %v961
        %v966 = vand.u32 2147483647, %v955
        %vm967 = vcmp.eq.f32.partialorder %v966, 8.507059e+37
        %v968 = vand.u32 %v955, 2147483648
        %v969 = vor.u32 1.1754944e-38, %v968
        %v970 = vsel %vm967, %v969, %v965
        %v971 = vmul.f32 1.0, %v970
        %v972 = vrcp.pop %v956
        %v973 = vmul.f32 %v956, %v972
        %v974 = vsub.f32 1.0, %v973
        %v975 = vmul.f32 %v972, %v974
        %v976 = vadd.f32 %v972, %v975
        %vm977 = vweird.f32 %v956
        %vm978 = vweird.f32 %v972
        %vm979 = vmor %vm977, %vm978
        %v980 = vsel %vm979, %v972, %v976
        %v981 = vand.u32 2147483647, %v956
        %vm982 = vcmp.eq.f32.partialorder %v981, 8.507059e+37
        %v983 = vand.u32 %v956, 2147483648
        %v984 = vor.u32 1.1754944e-38, %v983
        %v985 = vsel %vm982, %v984, %v980
        %v986 = vmul.f32 1.0, %v985
        %v987 = vperm.slane %v971, 0
        %v988 = vperm.slane %v986, 0
        %v989 = vmul.f32 %v411, %v987
        %v990 = vmul.f32 %v412, %v988
        %v991 = vmul.f32 %v413, %v987
        %v992 = vmul.f32 %v414, %v988
        %v993 = vmul.f32 %v415, %v987
        %v994 = vmul.f32 %v416, %v988
        %v995 = vmul.f32 %v417, %v987
        %v996 = vmul.f32 %v418, %v988
        %997 = vst [vmem:[%s234] sm:$0xff] %v989
        %998 = vst [vmem:[%s234 + $0x8] sm:$0xff] %v990
        %999 = vst [vmem:[%s234 + $0x10] sm:$0xff] %v991
        %1000 = vst [vmem:[%s234 + $0x18] sm:$0xff] %v992
        %1001 = vst [vmem:[%s234 + $0x20] sm:$0xff] %v993
        %1002 = vst [vmem:[%s234 + $0x28] sm:$0xff] %v994
        %1003 = vst [vmem:[%s234 + $0x30] sm:$0xff] %v995
        %1004 = vst [vmem:[%s234 + $0x38] sm:$0xff] %v996
        %s1005 = sand.u32 %s119, 1
        %s1006 = scalar_lea.sflag [#allocation4], %s1005
        %s1007 = sand.u32 %s119, 1
        %s1008 = smul.addr %s1007, 64
        %s1009 = scalar_lea.vmem [#allocation7], %s1008
        // Predicated region
        $region45: #{tpu_custom_call.1} parent=35 // pred_check
          %p1010 = pneg %p129
        $region46: #{tpu_custom_call.1} parent=35 // pred_check_branch
          %1012 = sbr.rel (%p1010) target = $region48
        $region47: #{tpu_custom_call.1} parent=35 // pred_region
          %1014 = vsyncadd %s1006, 0
          %s1015 = smul.addr %s22, 8
          %s1016 = smul.addr %s1015, 8
          %s1017 = scalar_lea.hbm %s4, %s1016
          %s1018 = sshll.u32 %s1009, 4
          %s1019 = int_to_ptr.vmem [resolvable:$true] %s1018
          %s1020 = sshll.u32 %s1017, 4
          %s1021 = int_to_ptr.hbm [resolvable:$true] %s1020
          %1026 = dma.vmem_to_hbm [thread:$0]  %s1019, 1024, %s1021, %s1006, 256, 256, 16
        $region48: #{tpu_custom_call.1} parent=35 // pred_fallthru
          _
      $region36: #{tpu_custom_call.1} parent=5 // pred_fallthru
        _
      %p1027 = scmp.le.s32.totalorder 2, %s17
      // Predicated region
      $region49: #{tpu_custom_call.1} parent=5 // pred_check
        %p1028 = pneg %p1027
      $region50: #{tpu_custom_call.1} parent=5 // pred_check_branch
        %1030 = sbr.rel (%p1028) target = $region52
      $region51: #{tpu_custom_call.1} parent=5 // pred_region
        %s1031 = ssub.s32 %s17, 2
        // Predicated region
        $region53: #{tpu_custom_call.1} parent=51 // pred_check
          %p1032 = pneg %p135
        $region54: #{tpu_custom_call.1} parent=51 // pred_check_branch
          %1034 = sbr.rel (%p1032) target = $region56
        $region55: #{tpu_custom_call.1} parent=51 // pred_region
          %s1035 = sand.u32 %s120, 1
          %s1036 = scalar_lea.sflag [#allocation4], %s1035
          %s1037 = sand.u32 %s120, 1
          %s1038 = smul.addr %s1037, 64
          %s1039 = scalar_lea.vmem [#allocation7], %s1038
          %1041 = dma.done %s1036, 1024
        $region56: #{tpu_custom_call.1} parent=51 // pred_fallthru
          _
      $region52: #{tpu_custom_call.1} parent=5 // pred_fallthru
        _
    $region6: #{tpu_custom_call.1} parent=1 // loop_footer
      %s21 = sadd.s32 1, %s17
    $region7: #{tpu_custom_call.1} parent=1 // loop_footer_branch
      %16 = sbr.rel target = $region3
    $region8: #{tpu_custom_call.1} parent=1 // loop_exit
      _
    %1042 = vsyncpa [#allocation3], 1
    %s1043 = scalar_lea.sflag [#allocation3], 1
    %1044 = vsyncpa %s1043, 1
    %1045 = vsyncpa [#allocation6], 1
    %1046 = vsyncpa [#allocation4], 1
    %s1047 = scalar_lea.sflag [#allocation4], 1
    %1048 = vsyncpa %s1047, 1

</llo_original>
